<compile_context>
chip_gen: v7x
topology: tpu7x:2x2x1
jax: 0.10.0
libtpu: 0.0.40
codegen_flags: <defaults>
</compile_context>

<pallas_src>
import jax
import jax.numpy as jnp
from jax.experimental import pallas as pl
from jax.experimental.pallas import tpu as pltpu

LATENT = 16


def _decoder_1x1_kernel(w_ref, b_ref, z_ref, o_ref):
    """1x1 conv over channels (channel reduction + bias).

    w_ref : (C, 1)       per-channel weight column          (VMEM)
    b_ref : (1,)         bias scalar                        (SMEM)
    z_ref : (Bt, C, Tt)  input tile                         (VMEM)
    o_ref : (Bt, Tt)     output tile (channel dim squeezed) (VMEM)
    """
    z = z_ref[...].astype(jnp.float32)            # (Bt, C, Tt)
    w = w_ref[...].astype(jnp.float32)            # (C, 1)
    # Single fused VPU multiply + sublane (C axis) reduction for the whole
    # batch tile; weight lane-broadcast happens once, not per batch row.
    acc = jnp.sum(z * w[None, :, :], axis=1)      # (Bt, Tt), exact f32
    o_ref[...] = (acc + b_ref[0]).astype(o_ref.dtype)


def _choose_tiles(B, C, T, itemsize, *, budget_bytes=4 << 20, tiny_bytes=1 << 20):
    """Pick (batch_tile, time_tile) from a VMEM byte budget.

    - tiny inputs  -> one grid step (amortize per-step pipeline overhead)
    - otherwise    -> lane-aligned time tile sized so one input block is about
                      `budget_bytes`, capped so the time grid has >= 2 steps
                      (both v7x TensorCores contribute HBM bandwidth)
    - batch tile only shrinks (in multiples of 8) if a full-batch block would
      still blow the budget (keeps v7x's 64 MiB VMEM safe at large B).
    """
    total = B * C * T * itemsize
    if total <= tiny_bytes:
        return B, T

    if T <= 128:
        tt = T
    else:
        tt = max(128, (budget_bytes // (B * C * itemsize)) // 128 * 128)
        half = (-(-T // 2) + 127) // 128 * 128          # ceil(T/2) rounded up to 128
        tt = min(tt, half)                              # guarantees >= 2 time steps

    bt = B
    if B * C * tt * itemsize > budget_bytes and B >= 16:
        bt = max(8, (budget_bytes // (C * tt * itemsize)) // 8 * 8)
        bt = min(bt, B)
    return bt, tt


def decoder_forward(z, weight, bias):
    """z: (B, C, T), weight: (1, C, 1), bias: (1,)  ->  (B, 1, T)."""
    B, C, T = z.shape
    w_col = weight.reshape(C, 1).astype(jnp.float32)
    b_vec = bias.reshape(1).astype(jnp.float32)

    itemsize = jnp.dtype(z.dtype).itemsize
    bt, tt = _choose_tiles(B, C, T, itemsize)
    grid = (pl.cdiv(B, bt), pl.cdiv(T, tt))

    # Explicit scoped-VMEM budget: double-buffered input + output blocks plus
    # headroom (weights / bookkeeping).  Keeps big tiles legal on v5e's 16 MiB
    # default and well inside v7x's 64 MiB physical VMEM.
    block_bytes = (bt * C * tt + bt * tt) * itemsize
    vmem_limit = int(min(2 * 2 * block_bytes + (2 << 20), 64 << 20))

    out2d = pl.pallas_call(
        _decoder_1x1_kernel,
        out_shape=jax.ShapeDtypeStruct((B, T), z.dtype),
        grid_spec=pltpu.PrefetchScalarGridSpec(
            num_scalar_prefetch=0,
            grid=grid,
            in_specs=[
                pl.BlockSpec((C, 1), lambda b, t: (0, 0)),            # weights (shared)
                pl.BlockSpec(memory_space=pltpu.MemorySpace.SMEM),    # bias scalar
                pl.BlockSpec((bt, C, tt), lambda b, t: (b, 0, t)),    # input tile
            ],
            out_specs=pl.BlockSpec((bt, tt), lambda b, t: (b, t)),
        ),
        compiler_params=pltpu.CompilerParams(
            dimension_semantics=("parallel", "parallel"),
            vmem_limit_bytes=vmem_limit,
        ),
    )(w_col, b_vec, z)

    return out2d.reshape(B, 1, T)   # free metadata reshape back to Conv1d layout


def reference(z, weight, bias):
    """Pure-JAX reference matching PyTorch Conv1d(latent, 1, kernel_size=1)."""
    return jnp.einsum("ock,bct->bot", weight, z) + bias[None, :, None]


if __name__ == "__main__":
    key = jax.random.PRNGKey(0)
    kz, kw, kb = jax.random.split(key, 3)

    B, C, T = 2, LATENT, 256  # (batch, latent_dim, time)
    z = jax.random.normal(kz, (B, C, T), dtype=jnp.float32)

    # Deterministic Conv1d-style parameters (uniform +-1/sqrt(fan_in)).
    bound = 1.0 / (C ** 0.5)
    weight = jax.random.uniform(kw, (1, C, 1), dtype=jnp.float32,
                                minval=-bound, maxval=bound)
    bias = jax.random.uniform(kb, (1,), dtype=jnp.float32,
                              minval=-bound, maxval=bound)

    out = decoder_forward(z, weight, bias)
    out = jax.block_until_ready(out)

    ref = reference(z, weight, bias)
    assert out.shape == (B, 1, T)
    assert jnp.allclose(out, ref, atol=1e-5, rtol=1e-5)

    print("KERNEL_OK")
</pallas_src>

<mosaic_0001>
module attributes {stable_mosaic.version = 11 : i64} {
  func.func @_decoder_1x1_kernel(%arg0: i32, %arg1: i32, %arg2: memref<16x1xf32, #tpu.memory_space<vmem>>, %arg3: memref<1xf32, #tpu.memory_space<smem>>, %arg4: memref<2x16x256xf32, #tpu.memory_space<vmem>>, %arg5: memref<2x256xf32, #tpu.memory_space<vmem>>) attributes {dimension_semantics = [#tpu.dimension_semantics<parallel>, #tpu.dimension_semantics<parallel>], iteration_bounds = array<i64: 1, 1>, scalar_prefetch = 0 : i64, scratch_operands = 0 : i64, tpu.core_type = #tpu.core_type<tc>, window_params = [{pipeline_mode = #tpu.pipeline_mode<synchronous>, transform_indices = @transform_0, window_bounds = array<i64: 16, 1>}, {transform_indices = @transform_1, window_bounds = array<i64: 1>}, {transform_indices = @transform_2, window_bounds = array<i64: 2, 16, 256>}, {transform_indices = @transform_3, window_bounds = array<i64: 2, 256>}]} {
    %c0 = arith.constant 0 : index
    %c0_0 = arith.constant 0 : index
    %c0_1 = arith.constant 0 : index
    %0 = vector.load %arg4[%c0, %c0_0, %c0_1] : memref<2x16x256xf32, #tpu.memory_space<vmem>>, vector<2x16x256xf32>
    %c0_2 = arith.constant 0 : index
    %c0_3 = arith.constant 0 : index
    %1 = vector.load %arg2[%c0_2, %c0_3] : memref<16x1xf32, #tpu.memory_space<vmem>>, vector<16x1xf32>
    %2 = vector.shape_cast %1 : vector<16x1xf32> to vector<1x16x1xf32>
    %3 = vector.broadcast %2 : vector<1x16x1xf32> to vector<2x16x256xf32>
    %4 = arith.mulf %0, %3 : vector<2x16x256xf32>
    %cst = arith.constant dense<0.000000e+00> : vector<2x256xf32>
    %5 = vector.multi_reduction <add>, %4, %cst [1] : vector<2x16x256xf32> to vector<2x256xf32>
    %c0_4 = arith.constant 0 : index
    %6 = memref.load %arg3[%c0_4] : memref<1xf32, #tpu.memory_space<smem>>
    %7 = vector.broadcast %6 : f32 to vector<2x256xf32>
    %8 = arith.addf %5, %7 : vector<2x256xf32>
    %c0_5 = arith.constant 0 : index
    %c0_6 = arith.constant 0 : index
    %9 = vector.load %arg5[%c0_5, %c0_6] : memref<2x256xf32, #tpu.memory_space<vmem>>, vector<2x256xf32>
    tpu.vector_store %arg5[%c0_5, %c0_6], %8 {strides = array<i32>} : memref<2x256xf32, #tpu.memory_space<vmem>>, vector<2x256xf32>,
    return
  }
  func.func @transform_0(%arg0: i32, %arg1: i32) -> (i32, i32) {
    %c0_i32 = arith.constant 0 : i32
    %c0_i32_0 = arith.constant 0 : i32
    %c0_i32_1 = arith.constant 0 : i32
    return %c0_i32, %c0_i32_0 : i32, i32
  }
  func.func @transform_1(%arg0: i32, %arg1: i32) -> i32 {
    %c0_i32 = arith.constant 0 : i32
    %c0_i32_0 = arith.constant 0 : i32
    return %c0_i32 : i32
  }
  func.func @transform_2(%arg0: i32, %arg1: i32) -> (i32, i32, i32) {
    %c0_i32 = arith.constant 0 : i32
    %c0_i32_0 = arith.constant 0 : i32
    return %arg0, %c0_i32, %arg1 : i32, i32, i32
  }
  func.func @transform_3(%arg0: i32, %arg1: i32) -> (i32, i32) {
    %c0_i32 = arith.constant 0 : i32
    return %arg0, %arg1 : i32, i32
  }
}

</mosaic_0001>

<llo_original>
// kernel: tpu_custom_call.1
$region0: #{tpu_custom_call.1}
  #allocation0 [shape = 'u32[]', space=smem, size = 0x4, offset = 0x4, fixed_abs, tag = 'smem constant byte address 0x4 - core index']
  #allocation1 [shape = 'u32[144,128]{1,0:T(1,128)}', space=vmem, size = 0x12000, scoped, tag = 'internal scratch']
  #allocation2 [shape = 'f32[1]{0:T(128)S(6)}', space=smem, size = 0x200, scoped, tag = 'scoped memory for tpu_custom_call.1']
  %s0 = inlined_call_operand.vmem [shape: f32[16,1], index: 0, kind: input, shape index: {}]
  %s1 = inlined_call_operand.<no memory space> [shape: f32[1], index: 1, kind: input, shape index: {}]
  %s2 = inlined_call_operand.hbm [shape: f32[2,16,256], index: 2, kind: input, shape index: {}]
  %s3 = inlined_call_operand.hbm [shape: f32[2,256], index: 3, kind: output, shape index: {}]
  %s4 = sld [smem:[#allocation0]]
  $region26: #{tpu_custom_call.1} parent=0
    _
  %s6 = ssub.s32 1, %s4
  %s7 = scalar_select 0, %s6, %s4
  %8 = sst [smem:[#allocation2]] %s1
  $region1: #{tpu_custom_call.1} parent=0
    #allocation3 [shape = 'u8[32768]{0}', space=vmem, size = 0x8000, scoped, tag = 'input window, operand 2, single buffered']
    #allocation4 [shape = 's32[1]{0}', space=sflag, size = 0x4, scoped, tag = 'scoped memory for tpu_custom_call.1']
    #allocation5 [shape = 's32[1]{0}', space=sflag, size = 0x4, scoped, tag = 'scoped memory for tpu_custom_call.1']
    #allocation6 [shape = 'u8[2048]{0}', space=vmem, size = 0x800, scoped, tag = 'output window, operand 0, single buffered']
    %9 = vsyncpa [#allocation4], 0
    %10 = vsyncpa [#allocation5], 0
    // Predicated region
    $region2: #{tpu_custom_call.1} parent=1 // pred_check
      _
    $region3: #{tpu_custom_call.1} parent=1 // pred_check_branch
      %12 = sbr.rel (0) target = $region5
    $region4: #{tpu_custom_call.1} parent=1 // pred_region
      _
    $region5: #{tpu_custom_call.1} parent=1 // pred_fallthru
      _
    // Predicated region
    $region6: #{tpu_custom_call.1} parent=1 // pred_check
      _
    $region7: #{tpu_custom_call.1} parent=1 // pred_check_branch
      %14 = sbr.rel (0) target = $region9
    $region8: #{tpu_custom_call.1} parent=1 // pred_region
      _
    $region9: #{tpu_custom_call.1} parent=1 // pred_fallthru
      _
    // Predicated region
    $region10: #{tpu_custom_call.1} parent=1 // pred_check
      _
    $region11: #{tpu_custom_call.1} parent=1 // pred_check_branch
      %16 = sbr.rel (0) target = $region13
    $region12: #{tpu_custom_call.1} parent=1 // pred_region
      %s18 = ssub.s32 1024, 1024
      %19 = vsyncadd [#allocation4], %s18
      %s20 = sshll.u32 [#allocation3], 4
      %s21 = int_to_ptr.vmem [resolvable:$true] %s20
      %26 = dma.hbm_to_vmem [thread:$0]  %s2, 1024, %s21, [#allocation4], 256, 256, 16
    $region13: #{tpu_custom_call.1} parent=1 // pred_fallthru
      _
    // Predicated region
    $region14: #{tpu_custom_call.1} parent=1 // pred_check
      _
    $region15: #{tpu_custom_call.1} parent=1 // pred_check_branch
      %28 = sbr.rel (0) target = $region17
    $region16: #{tpu_custom_call.1} parent=1 // pred_region
      %29 = dma.done [#allocation4], 1024
    $region17: #{tpu_custom_call.1} parent=1 // pred_fallthru
      _
    %v30 = vld [vmem:[#allocation3] sm:$0xff]
    %v31 = vld [vmem:[#allocation3 + $0x8] sm:$0xff]
    %v32 = vld [vmem:[#allocation3 + $0x10] sm:$0xff]
    %v33 = vld [vmem:[#allocation3 + $0x18] sm:$0xff]
    %v34 = vld [vmem:[#allocation3 + $0x20] sm:$0xff]
    %v35 = vld [vmem:[#allocation3 + $0x28] sm:$0xff]
    %v36 = vld [vmem:[#allocation3 + $0x30] sm:$0xff]
    %v37 = vld [vmem:[#allocation3 + $0x38] sm:$0xff]
    %v38 = vld [vmem:[%s0] sm:$0xff]
    %v39 = vld [vmem:[%s0 + $0x8] sm:$0xff]
    %41 = vset.pattern.permute.xlu0 0
    %42 = vperm.xlu0 %41, %v38
    %v43 = vpop.permute.xlu0 %42
    %46 = vset.pattern.permute.xlu0 0
    %47 = vperm.xlu0 %46, %v39
    %v48 = vpop.permute.xlu0 %47
    %v50 = vmul.f32 %v30, %v43
    %v51 = vmul.f32 %v31, %v43
    %v52 = vmul.f32 %v32, %v48
    %v53 = vmul.f32 %v33, %v48
    %v54 = vmul.f32 %v34, %v43
    %v55 = vmul.f32 %v35, %v43
    %v56 = vmul.f32 %v36, %v48
    %v57 = vmul.f32 %v37, %v48
    %v58 = vadd.f32 %v50, %v52
    %v59 = vrot.slane %v58, 4
    %v60 = vadd.f32 %v58, %v59
    %v61 = vrot.slane %v60, 2
    %v62 = vadd.f32 %v60, %v61
    %v63 = vrot.slane %v62, 1
    %v64 = vadd.f32 %v62, %v63
    %v65 = vadd.f32 %v51, %v53
    %v66 = vrot.slane %v65, 4
    %v67 = vadd.f32 %v65, %v66
    %v68 = vrot.slane %v67, 2
    %v69 = vadd.f32 %v67, %v68
    %v70 = vrot.slane %v69, 1
    %v71 = vadd.f32 %v69, %v70
    %v72 = vadd.f32 %v54, %v56
    %v73 = vrot.slane %v72, 4
    %v74 = vadd.f32 %v72, %v73
    %v75 = vrot.slane %v74, 2
    %v76 = vadd.f32 %v74, %v75
    %v77 = vrot.slane %v76, 1
    %v78 = vadd.f32 %v76, %v77
    %v79 = vadd.f32 %v55, %v57
    %v80 = vrot.slane %v79, 4
    %v81 = vadd.f32 %v79, %v80
    %v82 = vrot.slane %v81, 2
    %v83 = vadd.f32 %v81, %v82
    %v84 = vrot.slane %v83, 1
    %v85 = vadd.f32 %v83, %v84
    %s86 = sld [smem:[#allocation2]]
    %v87 = vstv %s86
    %v88 = vadd.f32 %v64, %v87
    %v89 = vadd.f32 %v71, %v87
    %v90 = vadd.f32 %v78, %v87
    %v91 = vadd.f32 %v85, %v87
    %v96 = vcombine.low %v88, %v89
    %v98 = vunpack.c.l.s4 1983009808
    %v99 = vunpack.c.0.s8 %v98
    %v100 = vlaneseq
    %v101 = vshrl.u32 %v100, 7
    %v102 = vsub.s32 %v99, %v101
    %v103 = vrot.slane %v96, %v102
    %v104 = vcombine.low %v90, %v91
    %v106 = vunpack.c.l.s4 1983009808
    %v107 = vunpack.c.0.s8 %v106
    %v108 = vlaneseq
    %v109 = vshrl.u32 %v108, 7
    %v110 = vsub.s32 %v107, %v109
    %v111 = vrot.slane %v104, %v110
    %vm112 = vcmask 1044484
    %v113 = vsel %vm112, %v103, %v103
    %vm114 = vcmask 1046534
    %v115 = vsel %vm114, %v103, %v113
    %v116 = vrot.slane %v111, 7
    %vm117 = vcmask 1041409
    %v118 = vsel %vm117, %v116, %v115
    %vm119 = vcmask 1043459
    %v120 = vsel %vm119, %v116, %v118
    %vm121 = vcmask 1045509
    %v122 = vsel %vm121, %v116, %v120
    %vm123 = vcmask 1047559
    %v124 = vsel %vm123, %v116, %v122
    %126 = vst [vmem:[#allocation6] sm:$0xf] %v124
    // Predicated region
    $region18: #{tpu_custom_call.1} parent=1 // pred_check
      _
    $region19: #{tpu_custom_call.1} parent=1 // pred_check_branch
      %128 = sbr.rel (0) target = $region21
    $region20: #{tpu_custom_call.1} parent=1 // pred_region
      %s130 = ssub.s32 64, 64
      %131 = vsyncadd [#allocation5], %s130
      %s133 = sshll.u32 [#allocation6], 4
      %s134 = int_to_ptr.vmem [resolvable:$true] %s133
      %136 = dma.vmem_to_hbm [thread:$0]  %s134, 64, %s3, [#allocation5]
    $region21: #{tpu_custom_call.1} parent=1 // pred_fallthru
      _
    // Predicated region
    $region22: #{tpu_custom_call.1} parent=1 // pred_check
      _
    $region23: #{tpu_custom_call.1} parent=1 // pred_check_branch
      %138 = sbr.rel (0) target = $region25
    $region24: #{tpu_custom_call.1} parent=1 // pred_region
      %139 = dma.done [#allocation5], 64
    $region25: #{tpu_custom_call.1} parent=1 // pred_fallthru
      _
    %140 = vsyncpa [#allocation4], 1
    %141 = vsyncpa [#allocation5], 1

</llo_original>
